<compile_context>
chip_gen: v7x
topology: tpu7x:2x2x1
jax: 0.10.0
libtpu: 0.0.40
codegen_flags: <defaults>
</compile_context>

<pallas_src>
import jax
import jax.numpy as jnp
import numpy as np
from jax.experimental import pallas as pl
from jax.experimental.pallas import tpu as pltpu


EPS = 1e-6


# ---------------------------------------------------------------------------
# Fused kernel: LayerNorm -> Linear sublayer -> (dropout=identity) -> residual add
# Operates on a (block_m, D) tile of tokens.  I/O in native dtype, math in f32,
# matmul with bf16 inputs / f32 accumulation.
# ---------------------------------------------------------------------------
def sublayer_connection_kernel(x_ref, wt_ref, p_ref, o_ref):
    x = x_ref[...].astype(jnp.float32)                    # (block_m, D)
    d = x.shape[-1]

    # --- LayerNorm (torch semantics: unbiased std, eps added to std) ---
    mean = jnp.mean(x, axis=-1, keepdims=True)
    xc = x - mean
    var_unbiased = jnp.sum(xc * xc, axis=-1, keepdims=True) * (1.0 / (d - 1))
    std = jnp.sqrt(var_unbiased)
    inv_std = pl.reciprocal(std + EPS, approx=True)       # EUP slot, frees VALU

    a2 = p_ref[0:1, :]                                    # (1, D) f32, resident
    b_eff = p_ref[1:2, :]                                 # (1, D) f32, resident
    scaled = (a2 * xc) * inv_std                          # == a2 * (x-mean)/(std+eps)

    # --- sublayer Linear: bf16 MXU inputs, f32 accumulation; folded bias b_eff ---
    y = jnp.dot(scaled.astype(jnp.bfloat16), wt_ref[...],
                preferred_element_type=jnp.float32) + b_eff

    # --- dropout (identity at inference) + residual, cast back to native dtype ---
    o_ref[...] = (x + y).astype(o_ref.dtype)


# ---------------------------------------------------------------------------
# One-time parameter prep (hoisted out of the per-forward path)
# ---------------------------------------------------------------------------
def prepare_sublayer_connection_params(w, b, a2, b2):
    """w: (D, D) torch-layout Linear weight; b, a2, b2: (D,)."""
    D = w.shape[0]
    w32 = w.astype(jnp.float32)
    wt_bf16 = w32.T.astype(jnp.bfloat16)                          # (D, D), x @ wt == x @ w.T
    # Fold LayerNorm bias through the linear layer:
    #   normed @ w.T + b = (a2*xc*inv) @ w.T + (b2 @ w.T + b)
    b_eff = b2.astype(jnp.float32) @ w32.T + b.astype(jnp.float32)
    params = jnp.stack([a2.astype(jnp.float32), b_eff], axis=0)   # (2, D) f32
    return wt_bf16, params


def _choose_block_m(m):
    # Big row blocks amortize the ~0.35us/step pipeline overhead; with D=128 even a
    # 2048-row bf16 block is only 512 KiB per buffer (well inside every gen's VMEM).
    for bm in (2048, 1024, 512, 256, 128, 64, 32, 16):
        if m >= bm:
            return bm
    return 16


# ---------------------------------------------------------------------------
# Forward wrapper
# ---------------------------------------------------------------------------
def sublayer_connection_forward(x, wt_bf16, params):
    """x: (B, S, D) in its native dtype (bf16 recommended); wt_bf16/params from prep."""
    B, S, D = x.shape
    M = B * S
    block_m = _choose_block_m(M)
    Mp = pl.cdiv(M, block_m) * block_m                 # pad rows instead of one huge block
    grid = (Mp // block_m,)

    x2 = x.reshape(M, D)                               # lane-dense (M, 128) slab, no cast
    if Mp != M:
        x2 = jnp.pad(x2, ((0, Mp - M), (0, 0)))        # zero rows are benign (discarded)

    itemsize = jnp.dtype(x.dtype).itemsize
    cost = pl.CostEstimate(
        flops=2 * Mp * D * D + 8 * Mp * D,
        transcendentals=2 * Mp,                                     # sqrt + reciprocal / row
        bytes_accessed=2 * Mp * D * itemsize + 2 * D * D + 4 * 2 * D,
    )

    grid_spec = pl.GridSpec(
        grid=grid,
        in_specs=[
            pl.BlockSpec((block_m, D), lambda i: (i, 0)),   # x rows (streamed)
            pl.BlockSpec((D, D), lambda i: (0, 0)),         # sublayer weight (resident, bf16)
            pl.BlockSpec((2, D), lambda i: (0, 0)),         # packed [a2; b_eff] (resident, f32)
        ],
        out_specs=pl.BlockSpec((block_m, D), lambda i: (i, 0)),
    )

    out2 = pl.pallas_call(
        sublayer_connection_kernel,
        out_shape=jax.ShapeDtypeStruct((Mp, D), x.dtype),
        grid_spec=grid_spec,
        compiler_params=pltpu.CompilerParams(
            dimension_semantics=("parallel",)),
        cost_estimate=cost,
    )(x2, wt_bf16, params)

    return out2[:M].reshape(B, S, D)


# ---------------------------------------------------------------------------
# Pure-JAX f32 reference (mirrors the PyTorch module exactly)
# ---------------------------------------------------------------------------
def ref_forward(x, w, b, a2, b2):
    x = x.astype(jnp.float32)
    w = w.astype(jnp.float32)
    b = b.astype(jnp.float32)
    a2 = a2.astype(jnp.float32)
    b2 = b2.astype(jnp.float32)
    d = x.shape[-1]
    mean = jnp.mean(x, axis=-1, keepdims=True)
    xc = x - mean
    std = jnp.sqrt(jnp.sum(xc * xc, axis=-1, keepdims=True) / (d - 1))
    normed = a2 * xc / (std + EPS) + b2
    y = normed @ w.T + b            # sublayer = Linear(D, D)
    return x + y                    # dropout = identity (eval)


if __name__ == "__main__":
    B, S, D = 4, 32, 128            # batch, seq, d_model (lane-dense last dim)

    key = jax.random.PRNGKey(0)
    kx, kw, kb, ka, kb2 = jax.random.split(key, 5)

    # Native bf16 activations (typical transformer stack); params generated in f32.
    x = jax.random.normal(kx, (B, S, D), dtype=jnp.float32).astype(jnp.bfloat16)
    w = (jax.random.normal(kw, (D, D), dtype=jnp.float32) / np.sqrt(D))
    b = 0.1 * jax.random.normal(kb, (D,), dtype=jnp.float32)
    a2 = 1.0 + 0.1 * jax.random.normal(ka, (D,), dtype=jnp.float32)   # LayerNorm gain
    b2 = 0.1 * jax.random.normal(kb2, (D,), dtype=jnp.float32)        # LayerNorm bias

    wt_bf16, params = prepare_sublayer_connection_params(w, b, a2, b2)

    out = sublayer_connection_forward(x, wt_bf16, params)
    jax.block_until_ready(out)

    out_ref = ref_forward(x, w, b, a2, b2)
    # bf16 I/O + bf16-input MXU matmul -> compare at bf16-level tolerance.
    np.testing.assert_allclose(np.asarray(out, dtype=np.float32),
                               np.asarray(out_ref),
                               rtol=5e-2, atol=5e-2)

    print("KERNEL_OK")
</pallas_src>

<mosaic_0001>
module attributes {stable_mosaic.version = 11 : i64} {
  func.func @sublayer_connection_kernel(%arg0: i32, %arg1: memref<128x128xbf16, #tpu.memory_space<vmem>>, %arg2: memref<128x128xbf16, #tpu.memory_space<vmem>>, %arg3: memref<2x128xf32, #tpu.memory_space<vmem>>, %arg4: memref<128x128xbf16, #tpu.memory_space<vmem>>) attributes {dimension_semantics = [#tpu.dimension_semantics<parallel>], iteration_bounds = array<i64: 1>, scalar_prefetch = 0 : i64, scratch_operands = 0 : i64, tpu.core_type = #tpu.core_type<tc>, window_params = [{transform_indices = @transform_0, window_bounds = array<i64: 128, 128>}, {pipeline_mode = #tpu.pipeline_mode<synchronous>, transform_indices = @transform_1, window_bounds = array<i64: 128, 128>}, {pipeline_mode = #tpu.pipeline_mode<synchronous>, transform_indices = @transform_2, window_bounds = array<i64: 2, 128>}, {transform_indices = @transform_3, window_bounds = array<i64: 128, 128>}]} {
    %c0 = arith.constant 0 : index
    %c0_0 = arith.constant 0 : index
    %0 = vector.load %arg1[%c0, %c0_0] : memref<128x128xbf16, #tpu.memory_space<vmem>>, vector<128x128xbf16>
    %1 = arith.extf %0 : vector<128x128xbf16> to vector<128x128xf32>
    %cst = arith.constant dense<0.000000e+00> : vector<128xf32>
    %2 = vector.multi_reduction <add>, %1, %cst [1] : vector<128x128xf32> to vector<128xf32>
    %3 = vector.shape_cast %2 : vector<128xf32> to vector<128x1xf32>
    %cst_1 = arith.constant 1.280000e+02 : f32
    %4 = vector.broadcast %cst_1 : f32 to vector<128x1xf32>
    %5 = arith.divf %3, %4 : vector<128x1xf32>
    %6 = vector.broadcast %5 : vector<128x1xf32> to vector<128x128xf32>
    %7 = arith.subf %1, %6 : vector<128x128xf32>
    %8 = arith.mulf %7, %7 : vector<128x128xf32>
    %cst_2 = arith.constant dense<0.000000e+00> : vector<128xf32>
    %9 = vector.multi_reduction <add>, %8, %cst_2 [1] : vector<128x128xf32> to vector<128xf32>
    %10 = vector.shape_cast %9 : vector<128xf32> to vector<128x1xf32>
    %cst_3 = arith.constant 0.00787401571 : f32
    %11 = vector.broadcast %cst_3 : f32 to vector<128x1xf32>
    %12 = arith.mulf %10, %11 : vector<128x1xf32>
    %13 = math.sqrt %12 : vector<128x1xf32>
    %cst_4 = arith.constant 9.99999997E-7 : f32
    %14 = vector.broadcast %cst_4 : f32 to vector<128x1xf32>
    %15 = arith.addf %13, %14 : vector<128x1xf32>
    %16 = tpu.reciprocal %15 {approx = true} : vector<128x1xf32> -> vector<128x1xf32>
    %c0_5 = arith.constant 0 : index
    %c0_6 = arith.constant 0 : index
    %17 = vector.load %arg3[%c0_5, %c0_6] : memref<2x128xf32, #tpu.memory_space<vmem>>, vector<1x128xf32>
    %c1 = arith.constant 1 : index
    %c0_7 = arith.constant 0 : index
    %18 = vector.load %arg3[%c1, %c0_7] : memref<2x128xf32, #tpu.memory_space<vmem>>, vector<1x128xf32>
    %19 = vector.broadcast %17 : vector<1x128xf32> to vector<128x128xf32>
    %20 = arith.mulf %19, %7 : vector<128x128xf32>
    %21 = vector.broadcast %16 : vector<128x1xf32> to vector<128x128xf32>
    %22 = arith.mulf %20, %21 : vector<128x128xf32>
    %23 = arith.truncf %22 : vector<128x128xf32> to vector<128x128xbf16>
    %c0_8 = arith.constant 0 : index
    %c0_9 = arith.constant 0 : index
    %24 = vector.load %arg2[%c0_8, %c0_9] : memref<128x128xbf16, #tpu.memory_space<vmem>>, vector<128x128xbf16>
    %cst_10 = arith.constant dense<0.000000e+00> : vector<128x128xf32>
    %25 = tpu.matmul %23, %24, %cst_10 {dimension_numbers = #tpu.dot_dimension_numbers<[1], [0], [0], [1], [0, 0, 1, 1], [], []>} : vector<128x128xbf16>, vector<128x128xbf16>, vector<128x128xf32> -> vector<128x128xf32>
    %26 = vector.broadcast %18 : vector<1x128xf32> to vector<128x128xf32>
    %27 = arith.addf %25, %26 : vector<128x128xf32>
    %28 = arith.addf %1, %27 : vector<128x128xf32>
    %29 = arith.truncf %28 : vector<128x128xf32> to vector<128x128xbf16>
    %c0_11 = arith.constant 0 : index
    %c0_12 = arith.constant 0 : index
    %30 = vector.load %arg4[%c0_11, %c0_12] : memref<128x128xbf16, #tpu.memory_space<vmem>>, vector<128x128xbf16>
    tpu.vector_store %arg4[%c0_11, %c0_12], %29 {strides = array<i32>} : memref<128x128xbf16, #tpu.memory_space<vmem>>, vector<128x128xbf16>,
    return
  }
  func.func @transform_0(%arg0: i32) -> (i32, i32) {
    %c0_i32 = arith.constant 0 : i32
    %c0_i32_0 = arith.constant 0 : i32
    return %arg0, %c0_i32 : i32, i32
  }
  func.func @transform_1(%arg0: i32) -> (i32, i32) {
    %c0_i32 = arith.constant 0 : i32
    %c0_i32_0 = arith.constant 0 : i32
    %c0_i32_1 = arith.constant 0 : i32
    return %c0_i32, %c0_i32_0 : i32, i32
  }
  func.func @transform_2(%arg0: i32) -> (i32, i32) {
    %c0_i32 = arith.constant 0 : i32
    %c0_i32_0 = arith.constant 0 : i32
    %c0_i32_1 = arith.constant 0 : i32
    return %c0_i32, %c0_i32_0 : i32, i32
  }
  func.func @transform_3(%arg0: i32) -> (i32, i32) {
    %c0_i32 = arith.constant 0 : i32
    %c0_i32_0 = arith.constant 0 : i32
    return %arg0, %c0_i32 : i32, i32
  }
}

</mosaic_0001>

<llo_original>
// kernel: tpu_custom_call.1
$region0: #{tpu_custom_call.1}
  #allocation0 [shape = 'u32[]', space=smem, size = 0x4, offset = 0x4, fixed_abs, tag = 'smem constant byte address 0x4 - core index']
  #allocation1 [shape = 'u32[144,128]{1,0:T(1,128)}', space=vmem, size = 0x12000, scoped, tag = 'internal scratch']
  %s0 = inlined_call_operand.hbm [shape: bf16[128,128], index: 0, kind: input, shape index: {}]
  %s1 = inlined_call_operand.hbm [shape: bf16[128,128], index: 1, kind: input, shape index: {}]
  %s2 = inlined_call_operand.vmem [shape: f32[2,128], index: 2, kind: input, shape index: {}]
  %s3 = inlined_call_operand.hbm [shape: bf16[128,128], index: 3, kind: output, shape index: {}]
  %s4 = sld [smem:[#allocation0]]
  $region30: #{tpu_custom_call.1} parent=0
    _
  %s6 = ssub.s32 1, %s4
  %s7 = scalar_select 0, %s6, %s4
  $region1: #{tpu_custom_call.1} parent=0
    #allocation2 [shape = 'u8[32768]{0}', space=vmem, size = 0x8000, scoped, tag = 'input window, operand 0, single buffered']
    #allocation3 [shape = 's32[1]{0}', space=sflag, size = 0x4, scoped, tag = 'scoped memory for tpu_custom_call.1']
    #allocation4 [shape = 's32[1]{0}', space=sflag, size = 0x4, scoped, tag = 'scoped memory for tpu_custom_call.1']
    #allocation5 [shape = 'u8[32768]{0}', space=vmem, size = 0x8000, scoped, tag = 'input window, operand 1, single buffered']
    #allocation6 [shape = 's32[1]{0}', space=sflag, size = 0x4, scoped, tag = 'scoped memory for tpu_custom_call.1']
    #allocation7 [shape = 'u8[32768]{0}', space=vmem, size = 0x8000, scoped, tag = 'output window, operand 0, single buffered']
    %8 = vsyncpa [#allocation3], 0
    %9 = vsyncpa [#allocation6], 0
    %10 = vsyncpa [#allocation4], 0
    // Predicated region
    $region2: #{tpu_custom_call.1} parent=1 // pred_check
      _
    $region3: #{tpu_custom_call.1} parent=1 // pred_check_branch
      %12 = sbr.rel (0) target = $region5
    $region4: #{tpu_custom_call.1} parent=1 // pred_region
      %s14 = ssub.s32 1024, 1024
      %15 = vsyncadd [#allocation3], %s14
      %s16 = sshll.u32 [#allocation2], 4
      %s17 = int_to_ptr.vmem [resolvable:$true] %s16
      %22 = dma.hbm_to_vmem [thread:$0]  %s0, 1024, %s17, [#allocation3], 64, 64, 4
    $region5: #{tpu_custom_call.1} parent=1 // pred_fallthru
      _
    // Predicated region
    $region6: #{tpu_custom_call.1} parent=1 // pred_check
      _
    $region7: #{tpu_custom_call.1} parent=1 // pred_check_branch
      %24 = sbr.rel (0) target = $region9
    $region8: #{tpu_custom_call.1} parent=1 // pred_region
      %s26 = ssub.s32 1024, 1024
      %27 = vsyncadd [#allocation6], %s26
      %s28 = sshll.u32 [#allocation5], 4
      %s29 = int_to_ptr.vmem [resolvable:$true] %s28
      %34 = dma.hbm_to_vmem [thread:$0]  %s1, 1024, %s29, [#allocation6], 64, 64, 4
    $region9: #{tpu_custom_call.1} parent=1 // pred_fallthru
      _
    // Predicated region
    $region10: #{tpu_custom_call.1} parent=1 // pred_check
      _
    $region11: #{tpu_custom_call.1} parent=1 // pred_check_branch
      %36 = sbr.rel (0) target = $region13
    $region12: #{tpu_custom_call.1} parent=1 // pred_region
      _
    $region13: #{tpu_custom_call.1} parent=1 // pred_fallthru
      _
    // Predicated region
    $region14: #{tpu_custom_call.1} parent=1 // pred_check
      _
    $region15: #{tpu_custom_call.1} parent=1 // pred_check_branch
      %38 = sbr.rel (0) target = $region17
    $region16: #{tpu_custom_call.1} parent=1 // pred_region
      %39 = dma.done [#allocation3], 1024
    $region17: #{tpu_custom_call.1} parent=1 // pred_fallthru
      _
    // Predicated region
    $region18: #{tpu_custom_call.1} parent=1 // pred_check
      _
    $region19: #{tpu_custom_call.1} parent=1 // pred_check_branch
      %41 = sbr.rel (0) target = $region21
    $region20: #{tpu_custom_call.1} parent=1 // pred_region
      %42 = dma.done [#allocation6], 1024
    $region21: #{tpu_custom_call.1} parent=1 // pred_fallthru
      _
    %v44 = vld [vmem:[#allocation2] sm:$0xf]
    %v45 = vld [vmem:[#allocation2 + $0x4] sm:$0xf]
    %v46 = vld [vmem:[#allocation2 + $0x8] sm:$0xf]
    %v47 = vld [vmem:[#allocation2 + $0xc] sm:$0xf]
    %v48 = vld [vmem:[#allocation2 + $0x10] sm:$0xf]
    %v49 = vld [vmem:[#allocation2 + $0x14] sm:$0xf]
    %v50 = vld [vmem:[#allocation2 + $0x18] sm:$0xf]
    %v51 = vld [vmem:[#allocation2 + $0x1c] sm:$0xf]
    %v52 = vld [vmem:[#allocation2 + $0x20] sm:$0xf]
    %v53 = vld [vmem:[#allocation2 + $0x24] sm:$0xf]
    %v54 = vld [vmem:[#allocation2 + $0x28] sm:$0xf]
    %v55 = vld [vmem:[#allocation2 + $0x2c] sm:$0xf]
    %v56 = vld [vmem:[#allocation2 + $0x30] sm:$0xf]
    %v57 = vld [vmem:[#allocation2 + $0x34] sm:$0xf]
    %v58 = vld [vmem:[#allocation2 + $0x38] sm:$0xf]
    %v59 = vld [vmem:[#allocation2 + $0x3c] sm:$0xf]
    %v60 = vunpack.c.l.bf16 %v44
    %v61 = vunpack.c.l.bf16 %v45
    %v62 = vunpack.c.l.bf16 %v46
    %v63 = vunpack.c.l.bf16 %v47
    %v64 = vunpack.c.l.bf16 %v48
    %v65 = vunpack.c.l.bf16 %v49
    %v66 = vunpack.c.l.bf16 %v50
    %v67 = vunpack.c.l.bf16 %v51
    %v68 = vunpack.c.l.bf16 %v52
    %v69 = vunpack.c.l.bf16 %v53
    %v70 = vunpack.c.l.bf16 %v54
    %v71 = vunpack.c.l.bf16 %v55
    %v72 = vunpack.c.l.bf16 %v56
    %v73 = vunpack.c.l.bf16 %v57
    %v74 = vunpack.c.l.bf16 %v58
    %v75 = vunpack.c.l.bf16 %v59
    %76 = vadd.xlane.f32.xlu0 %v60
    %v77 = vpop.xlane.xlu0 %76
    %78 = vadd.xlane.f32.xlu0 %v61
    %v79 = vpop.xlane.xlu0 %78
    %80 = vadd.xlane.f32.xlu0 %v62
    %v81 = vpop.xlane.xlu0 %80
    %82 = vadd.xlane.f32.xlu0 %v63
    %v83 = vpop.xlane.xlu0 %82
    %84 = vadd.xlane.f32.xlu0 %v64
    %v85 = vpop.xlane.xlu0 %84
    %86 = vadd.xlane.f32.xlu0 %v65
    %v87 = vpop.xlane.xlu0 %86
    %88 = vadd.xlane.f32.xlu0 %v66
    %v89 = vpop.xlane.xlu0 %88
    %90 = vadd.xlane.f32.xlu0 %v67
    %v91 = vpop.xlane.xlu0 %90
    %92 = vadd.xlane.f32.xlu0 %v68
    %v93 = vpop.xlane.xlu0 %92
    %94 = vadd.xlane.f32.xlu0 %v69
    %v95 = vpop.xlane.xlu0 %94
    %96 = vadd.xlane.f32.xlu0 %v70
    %v97 = vpop.xlane.xlu0 %96
    %98 = vadd.xlane.f32.xlu0 %v71
    %v99 = vpop.xlane.xlu0 %98
    %100 = vadd.xlane.f32.xlu0 %v72
    %v101 = vpop.xlane.xlu0 %100
    %102 = vadd.xlane.f32.xlu0 %v73
    %v103 = vpop.xlane.xlu0 %102
    %104 = vadd.xlane.f32.xlu0 %v74
    %v105 = vpop.xlane.xlu0 %104
    %106 = vadd.xlane.f32.xlu0 %v75
    %v107 = vpop.xlane.xlu0 %106
    %v108 = vrcp.pop 128.0
    %v109 = vmul.f32 %v77, %v108
    %v110 = vmul.f32 %v79, %v108
    %v111 = vmul.f32 %v81, %v108
    %v112 = vmul.f32 %v83, %v108
    %v113 = vmul.f32 %v85, %v108
    %v114 = vmul.f32 %v87, %v108
    %v115 = vmul.f32 %v89, %v108
    %v116 = vmul.f32 %v91, %v108
    %v117 = vmul.f32 %v93, %v108
    %v118 = vmul.f32 %v95, %v108
    %v119 = vmul.f32 %v97, %v108
    %v120 = vmul.f32 %v99, %v108
    %v121 = vmul.f32 %v101, %v108
    %v122 = vmul.f32 %v103, %v108
    %v123 = vmul.f32 %v105, %v108
    %v124 = vmul.f32 %v107, %v108
    %v125 = vsub.f32 %v60, %v109
    %v126 = vsub.f32 %v61, %v110
    %v127 = vsub.f32 %v62, %v111
    %v128 = vsub.f32 %v63, %v112
    %v129 = vsub.f32 %v64, %v113
    %v130 = vsub.f32 %v65, %v114
    %v131 = vsub.f32 %v66, %v115
    %v132 = vsub.f32 %v67, %v116
    %v133 = vsub.f32 %v68, %v117
    %v134 = vsub.f32 %v69, %v118
    %v135 = vsub.f32 %v70, %v119
    %v136 = vsub.f32 %v71, %v120
    %v137 = vsub.f32 %v72, %v121
    %v138 = vsub.f32 %v73, %v122
    %v139 = vsub.f32 %v74, %v123
    %v140 = vsub.f32 %v75, %v124
    %v141 = vmul.f32 %v125, %v125
    %v142 = vmul.f32 %v126, %v126
    %v143 = vmul.f32 %v127, %v127
    %v144 = vmul.f32 %v128, %v128
    %v145 = vmul.f32 %v129, %v129
    %v146 = vmul.f32 %v130, %v130
    %v147 = vmul.f32 %v131, %v131
    %v148 = vmul.f32 %v132, %v132
    %v149 = vmul.f32 %v133, %v133
    %v150 = vmul.f32 %v134, %v134
    %v151 = vmul.f32 %v135, %v135
    %v152 = vmul.f32 %v136, %v136
    %v153 = vmul.f32 %v137, %v137
    %v154 = vmul.f32 %v138, %v138
    %v155 = vmul.f32 %v139, %v139
    %v156 = vmul.f32 %v140, %v140
    %157 = vadd.xlane.f32.xlu0 %v141
    %v158 = vpop.xlane.xlu0 %157
    %159 = vadd.xlane.f32.xlu0 %v142
    %v160 = vpop.xlane.xlu0 %159
    %161 = vadd.xlane.f32.xlu0 %v143
    %v162 = vpop.xlane.xlu0 %161
    %163 = vadd.xlane.f32.xlu0 %v144
    %v164 = vpop.xlane.xlu0 %163
    %165 = vadd.xlane.f32.xlu0 %v145
    %v166 = vpop.xlane.xlu0 %165
    %167 = vadd.xlane.f32.xlu0 %v146
    %v168 = vpop.xlane.xlu0 %167
    %169 = vadd.xlane.f32.xlu0 %v147
    %v170 = vpop.xlane.xlu0 %169
    %171 = vadd.xlane.f32.xlu0 %v148
    %v172 = vpop.xlane.xlu0 %171
    %173 = vadd.xlane.f32.xlu0 %v149
    %v174 = vpop.xlane.xlu0 %173
    %175 = vadd.xlane.f32.xlu0 %v150
    %v176 = vpop.xlane.xlu0 %175
    %177 = vadd.xlane.f32.xlu0 %v151
    %v178 = vpop.xlane.xlu0 %177
    %179 = vadd.xlane.f32.xlu0 %v152
    %v180 = vpop.xlane.xlu0 %179
    %181 = vadd.xlane.f32.xlu0 %v153
    %v182 = vpop.xlane.xlu0 %181
    %183 = vadd.xlane.f32.xlu0 %v154
    %v184 = vpop.xlane.xlu0 %183
    %185 = vadd.xlane.f32.xlu0 %v155
    %v186 = vpop.xlane.xlu0 %185
    %187 = vadd.xlane.f32.xlu0 %v156
    %v188 = vpop.xlane.xlu0 %187
    %v189 = vmul.f32 %v158, 0.007874016
    %v190 = vmul.f32 %v160, 0.007874016
    %v191 = vmul.f32 %v162, 0.007874016
    %v192 = vmul.f32 %v164, 0.007874016
    %v193 = vmul.f32 %v166, 0.007874016
    %v194 = vmul.f32 %v168, 0.007874016
    %v195 = vmul.f32 %v170, 0.007874016
    %v196 = vmul.f32 %v172, 0.007874016
    %v197 = vmul.f32 %v174, 0.007874016
    %v198 = vmul.f32 %v176, 0.007874016
    %v199 = vmul.f32 %v178, 0.007874016
    %v200 = vmul.f32 %v180, 0.007874016
    %v201 = vmul.f32 %v182, 0.007874016
    %v202 = vmul.f32 %v184, 0.007874016
    %v203 = vmul.f32 %v186, 0.007874016
    %v204 = vmul.f32 %v188, 0.007874016
    %v205 = vrsqrt.pop %v189
    %v206 = vmul.f32 %v189, %v205
    %vm207 = vcmp.eq.f32.partialorder %v189, inf
    %v208 = vsel %vm207, %v189, %v206
    %vm209 = vcmp.eq.f32.partialorder %v189, 0.0
    %v210 = vand.u32 %v189, 2147483648
    %v211 = vsel %vm209, %v210, %v208
    %v212 = vrsqrt.pop %v190
    %v213 = vmul.f32 %v190, %v212
    %vm214 = vcmp.eq.f32.partialorder %v190, inf
    %v215 = vsel %vm214, %v190, %v213
    %vm216 = vcmp.eq.f32.partialorder %v190, 0.0
    %v217 = vand.u32 %v190, 2147483648
    %v218 = vsel %vm216, %v217, %v215
    %v219 = vrsqrt.pop %v191
    %v220 = vmul.f32 %v191, %v219
    %vm221 = vcmp.eq.f32.partialorder %v191, inf
    %v222 = vsel %vm221, %v191, %v220
    %vm223 = vcmp.eq.f32.partialorder %v191, 0.0
    %v224 = vand.u32 %v191, 2147483648
    %v225 = vsel %vm223, %v224, %v222
    %v226 = vrsqrt.pop %v192
    %v227 = vmul.f32 %v192, %v226
    %vm228 = vcmp.eq.f32.partialorder %v192, inf
    %v229 = vsel %vm228, %v192, %v227
    %vm230 = vcmp.eq.f32.partialorder %v192, 0.0
    %v231 = vand.u32 %v192, 2147483648
    %v232 = vsel %vm230, %v231, %v229
    %v233 = vrsqrt.pop %v193
    %v234 = vmul.f32 %v193, %v233
    %vm235 = vcmp.eq.f32.partialorder %v193, inf
    %v236 = vsel %vm235, %v193, %v234
    %vm237 = vcmp.eq.f32.partialorder %v193, 0.0
    %v238 = vand.u32 %v193, 2147483648
    %v239 = vsel %vm237, %v238, %v236
    %v240 = vrsqrt.pop %v194
    %v241 = vmul.f32 %v194, %v240
    %vm242 = vcmp.eq.f32.partialorder %v194, inf
    %v243 = vsel %vm242, %v194, %v241
    %vm244 = vcmp.eq.f32.partialorder %v194, 0.0
    %v245 = vand.u32 %v194, 2147483648
    %v246 = vsel %vm244, %v245, %v243
    %v247 = vrsqrt.pop %v195
    %v248 = vmul.f32 %v195, %v247
    %vm249 = vcmp.eq.f32.partialorder %v195, inf
    %v250 = vsel %vm249, %v195, %v248
    %vm251 = vcmp.eq.f32.partialorder %v195, 0.0
    %v252 = vand.u32 %v195, 2147483648
    %v253 = vsel %vm251, %v252, %v250
    %v254 = vrsqrt.pop %v196
    %v255 = vmul.f32 %v196, %v254
    %vm256 = vcmp.eq.f32.partialorder %v196, inf
    %v257 = vsel %vm256, %v196, %v255
    %vm258 = vcmp.eq.f32.partialorder %v196, 0.0
    %v259 = vand.u32 %v196, 2147483648
    %v260 = vsel %vm258, %v259, %v257
    %v261 = vrsqrt.pop %v197
    %v262 = vmul.f32 %v197, %v261
    %vm263 = vcmp.eq.f32.partialorder %v197, inf
    %v264 = vsel %vm263, %v197, %v262
    %vm265 = vcmp.eq.f32.partialorder %v197, 0.0
    %v266 = vand.u32 %v197, 2147483648
    %v267 = vsel %vm265, %v266, %v264
    %v268 = vrsqrt.pop %v198
    %v269 = vmul.f32 %v198, %v268
    %vm270 = vcmp.eq.f32.partialorder %v198, inf
    %v271 = vsel %vm270, %v198, %v269
    %vm272 = vcmp.eq.f32.partialorder %v198, 0.0
    %v273 = vand.u32 %v198, 2147483648
    %v274 = vsel %vm272, %v273, %v271
    %v275 = vrsqrt.pop %v199
    %v276 = vmul.f32 %v199, %v275
    %vm277 = vcmp.eq.f32.partialorder %v199, inf
    %v278 = vsel %vm277, %v199, %v276
    %vm279 = vcmp.eq.f32.partialorder %v199, 0.0
    %v280 = vand.u32 %v199, 2147483648
    %v281 = vsel %vm279, %v280, %v278
    %v282 = vrsqrt.pop %v200
    %v283 = vmul.f32 %v200, %v282
    %vm284 = vcmp.eq.f32.partialorder %v200, inf
    %v285 = vsel %vm284, %v200, %v283
    %vm286 = vcmp.eq.f32.partialorder %v200, 0.0
    %v287 = vand.u32 %v200, 2147483648
    %v288 = vsel %vm286, %v287, %v285
    %v289 = vrsqrt.pop %v201
    %v290 = vmul.f32 %v201, %v289
    %vm291 = vcmp.eq.f32.partialorder %v201, inf
    %v292 = vsel %vm291, %v201, %v290
    %vm293 = vcmp.eq.f32.partialorder %v201, 0.0
    %v294 = vand.u32 %v201, 2147483648
    %v295 = vsel %vm293, %v294, %v292
    %v296 = vrsqrt.pop %v202
    %v297 = vmul.f32 %v202, %v296
    %vm298 = vcmp.eq.f32.partialorder %v202, inf
    %v299 = vsel %vm298, %v202, %v297
    %vm300 = vcmp.eq.f32.partialorder %v202, 0.0
    %v301 = vand.u32 %v202, 2147483648
    %v302 = vsel %vm300, %v301, %v299
    %v303 = vrsqrt.pop %v203
    %v304 = vmul.f32 %v203, %v303
    %vm305 = vcmp.eq.f32.partialorder %v203, inf
    %v306 = vsel %vm305, %v203, %v304
    %vm307 = vcmp.eq.f32.partialorder %v203, 0.0
    %v308 = vand.u32 %v203, 2147483648
    %v309 = vsel %vm307, %v308, %v306
    %v310 = vrsqrt.pop %v204
    %v311 = vmul.f32 %v204, %v310
    %vm312 = vcmp.eq.f32.partialorder %v204, inf
    %v313 = vsel %vm312, %v204, %v311
    %vm314 = vcmp.eq.f32.partialorder %v204, 0.0
    %v315 = vand.u32 %v204, 2147483648
    %v316 = vsel %vm314, %v315, %v313
    %v317 = vadd.f32 %v211, 1e-06
    %v318 = vadd.f32 %v218, 1e-06
    %v319 = vadd.f32 %v225, 1e-06
    %v320 = vadd.f32 %v232, 1e-06
    %v321 = vadd.f32 %v239, 1e-06
    %v322 = vadd.f32 %v246, 1e-06
    %v323 = vadd.f32 %v253, 1e-06
    %v324 = vadd.f32 %v260, 1e-06
    %v325 = vadd.f32 %v267, 1e-06
    %v326 = vadd.f32 %v274, 1e-06
    %v327 = vadd.f32 %v281, 1e-06
    %v328 = vadd.f32 %v288, 1e-06
    %v329 = vadd.f32 %v295, 1e-06
    %v330 = vadd.f32 %v302, 1e-06
    %v331 = vadd.f32 %v309, 1e-06
    %v332 = vadd.f32 %v316, 1e-06
    %v333 = vrcp.pop %v317
    %v334 = vrcp.pop %v318
    %v335 = vrcp.pop %v319
    %v336 = vrcp.pop %v320
    %v337 = vrcp.pop %v321
    %v338 = vrcp.pop %v322
    %v339 = vrcp.pop %v323
    %v340 = vrcp.pop %v324
    %v341 = vrcp.pop %v325
    %v342 = vrcp.pop %v326
    %v343 = vrcp.pop %v327
    %v344 = vrcp.pop %v328
    %v345 = vrcp.pop %v329
    %v346 = vrcp.pop %v330
    %v347 = vrcp.pop %v331
    %v348 = vrcp.pop %v332
    %v349 = vld [vmem:[%s2] sm:$0x1]
    %v350 = vld [vmem:[%s2 + $0x1] sm:$0x1]
    %v351 = vlaneseq
    %v352 = vshrl.u32 %v351, 7
    %v353 = vsub.s32 0, %v352
    %v354 = vrot.slane %v349, %v353
    %v355 = vmul.f32 %v354, %v125
    %v356 = vmul.f32 %v354, %v126
    %v357 = vmul.f32 %v354, %v127
    %v358 = vmul.f32 %v354, %v128
    %v359 = vmul.f32 %v354, %v129
    %v360 = vmul.f32 %v354, %v130
    %v361 = vmul.f32 %v354, %v131
    %v362 = vmul.f32 %v354, %v132
    %v363 = vmul.f32 %v354, %v133
    %v364 = vmul.f32 %v354, %v134
    %v365 = vmul.f32 %v354, %v135
    %v366 = vmul.f32 %v354, %v136
    %v367 = vmul.f32 %v354, %v137
    %v368 = vmul.f32 %v354, %v138
    %v369 = vmul.f32 %v354, %v139
    %v370 = vmul.f32 %v354, %v140
    %v371 = vmul.f32 %v355, %v333
    %v372 = vmul.f32 %v356, %v334
    %v373 = vmul.f32 %v357, %v335
    %v374 = vmul.f32 %v358, %v336
    %v375 = vmul.f32 %v359, %v337
    %v376 = vmul.f32 %v360, %v338
    %v377 = vmul.f32 %v361, %v339
    %v378 = vmul.f32 %v362, %v340
    %v379 = vmul.f32 %v363, %v341
    %v380 = vmul.f32 %v364, %v342
    %v381 = vmul.f32 %v365, %v343
    %v382 = vmul.f32 %v366, %v344
    %v383 = vmul.f32 %v367, %v345
    %v384 = vmul.f32 %v368, %v346
    %v385 = vmul.f32 %v369, %v347
    %v386 = vmul.f32 %v370, %v348
    %v387 = vpack.c.bf16 %v372, %v371
    %v388 = vpack.c.bf16 %v374, %v373
    %v389 = vpack.c.bf16 %v376, %v375
    %v390 = vpack.c.bf16 %v378, %v377
    %v391 = vpack.c.bf16 %v380, %v379
    %v392 = vpack.c.bf16 %v382, %v381
    %v393 = vpack.c.bf16 %v384, %v383
    %v394 = vpack.c.bf16 %v386, %v385
    %v395 = vld [vmem:[#allocation5] sm:$0xf]
    %v396 = vld [vmem:[#allocation5 + $0x4] sm:$0xf]
    %v397 = vld [vmem:[#allocation5 + $0x8] sm:$0xf]
    %v398 = vld [vmem:[#allocation5 + $0xc] sm:$0xf]
    %v399 = vld [vmem:[#allocation5 + $0x10] sm:$0xf]
    %v400 = vld [vmem:[#allocation5 + $0x14] sm:$0xf]
    %v401 = vld [vmem:[#allocation5 + $0x18] sm:$0xf]
    %v402 = vld [vmem:[#allocation5 + $0x1c] sm:$0xf]
    %v403 = vld [vmem:[#allocation5 + $0x20] sm:$0xf]
    %v404 = vld [vmem:[#allocation5 + $0x24] sm:$0xf]
    %v405 = vld [vmem:[#allocation5 + $0x28] sm:$0xf]
    %v406 = vld [vmem:[#allocation5 + $0x2c] sm:$0xf]
    %v407 = vld [vmem:[#allocation5 + $0x30] sm:$0xf]
    %v408 = vld [vmem:[#allocation5 + $0x34] sm:$0xf]
    %v409 = vld [vmem:[#allocation5 + $0x38] sm:$0xf]
    %v410 = vld [vmem:[#allocation5 + $0x3c] sm:$0xf]
    %v411 = vlaneseq
    %v412 = vshrl.u32 %v411, 7
    %v413 = vsub.s32 0, %v412
    %v414 = vrot.slane %v350, %v413
    %v431 = vunpack.c.l.b16 %v395
    %v432 = vunpack.c.l.b16 %v396
    %v433 = vunpack.c.l.b16 %v397
    %v434 = vunpack.c.l.b16 %v398
    %v435 = vunpack.c.l.b16 %v399
    %v436 = vunpack.c.l.b16 %v400
    %v437 = vunpack.c.l.b16 %v401
    %v438 = vunpack.c.l.b16 %v402
    %v439 = vunpack.c.l.b16 %v403
    %v440 = vunpack.c.l.b16 %v404
    %v441 = vunpack.c.l.b16 %v405
    %v442 = vunpack.c.l.b16 %v406
    %v443 = vunpack.c.l.b16 %v407
    %v444 = vunpack.c.l.b16 %v408
    %v445 = vunpack.c.l.b16 %v409
    %v446 = vunpack.c.l.b16 %v410
    %v447 = vpack.c.b16 %v432, %v431
    %v448 = vpack.c.b16 %v434, %v433
    %v449 = vpack.c.b16 %v436, %v435
    %v450 = vpack.c.b16 %v438, %v437
    %v451 = vpack.c.b16 %v440, %v439
    %v452 = vpack.c.b16 %v442, %v441
    %v453 = vpack.c.b16 %v444, %v443
    %v454 = vpack.c.b16 %v446, %v445
    %463 = vmatprep.subr.bf16.mxu0 0
    %464 = vmatpush1.bf16.msra.mxu0 %v447
    %465 = vmatprep.subr.bf16.mxu0 0
    %466 = vmatpush1.bf16.msra.mxu0 %v448
    %467 = vmatprep.subr.bf16.mxu0 0
    %468 = vmatpush1.bf16.msra.mxu0 %v449
    %469 = vmatprep.subr.bf16.mxu0 0
    %470 = vmatpush1.bf16.msra.mxu0 %v450
    %471 = vmatprep.subr.bf16.mxu0 0
    %472 = vmatpush1.bf16.msra.mxu0 %v451
    %473 = vmatprep.subr.bf16.mxu0 0
    %474 = vmatpush1.bf16.msra.mxu0 %v452
    %475 = vmatprep.subr.bf16.mxu0 0
    %476 = vmatpush1.bf16.msra.mxu0 %v453
    %477 = vmatprep.subr.bf16.mxu0 0
    %478 = vmatpush1.bf16.msra.mxu0 %v454
    %479 = vmatprep.subr.bf16.mxu0 0
    %480 = vmatpush1.bf16.msra.mxu0 0
    %481 = vmatprep.subr.bf16.mxu0 0
    %482 = vmatpush1.bf16.msra.mxu0 0
    %483 = vmatprep.subr.bf16.mxu0 0
    %484 = vmatpush1.bf16.msra.mxu0 0
    %485 = vmatprep.subr.bf16.mxu0 0
    %486 = vmatpush1.bf16.msra.mxu0 0
    %487 = vmatprep.subr.bf16.mxu0 0
    %488 = vmatpush1.bf16.msra.mxu0 0
    %489 = vmatprep.subr.bf16.mxu0 0
    %490 = vmatpush1.bf16.msra.mxu0 0
    %491 = vmatprep.subr.bf16.mxu0 0
    %492 = vmatpush1.bf16.msra.mxu0 0
    %493 = vmatprep.subr.bf16.mxu0 0
    %494 = vmatpush1.bf16.msra.mxu0 0
    %495 = vmatprep.mubr.bf16.mxu0 0
    %496 = vmatmul.mubr.bf16.gmra.mrb[0].mxu0 %v387
    %v497 = vpop.f32.mrb[0].mxu0
    %v498 = vadd.f32 %v414, %v497
    %v499 = vpop.f32.mrb[0].mxu0
    %v500 = vpop.f32.mrb[0].mxu0
    %v501 = vadd.f32 %v414, %v500
    %v502 = vpop.f32.mrb[0].mxu0
    %503 = vmatprep.mubr.bf16.mxu0 0
    %504 = vmatmul.mubr.bf16.gmra.mrb[0].mxu0 %v388
    %v505 = vpop.f32.mrb[0].mxu0
    %v506 = vadd.f32 %v414, %v505
    %v507 = vpop.f32.mrb[0].mxu0
    %v508 = vpop.f32.mrb[0].mxu0
    %v509 = vadd.f32 %v414, %v508
    %v510 = vpop.f32.mrb[0].mxu0
    %511 = vmatprep.mubr.bf16.mxu0 0
    %512 = vmatmul.mubr.bf16.gmra.mrb[0].mxu0 %v389
    %v513 = vpop.f32.mrb[0].mxu0
    %v514 = vadd.f32 %v414, %v513
    %v515 = vpop.f32.mrb[0].mxu0
    %v516 = vpop.f32.mrb[0].mxu0
    %v517 = vadd.f32 %v414, %v516
    %v518 = vpop.f32.mrb[0].mxu0
    %519 = vmatprep.mubr.bf16.mxu0 0
    %520 = vmatmul.mubr.bf16.gmra.mrb[0].mxu0 %v390
    %v521 = vpop.f32.mrb[0].mxu0
    %v522 = vadd.f32 %v414, %v521
    %v523 = vpop.f32.mrb[0].mxu0
    %v524 = vpop.f32.mrb[0].mxu0
    %v525 = vadd.f32 %v414, %v524
    %v526 = vpop.f32.mrb[0].mxu0
    %527 = vmatprep.mubr.bf16.mxu0 0
    %528 = vmatmul.mubr.bf16.gmra.mrb[0].mxu0 %v391
    %v529 = vpop.f32.mrb[0].mxu0
    %v530 = vadd.f32 %v414, %v529
    %v531 = vpop.f32.mrb[0].mxu0
    %v532 = vpop.f32.mrb[0].mxu0
    %v533 = vadd.f32 %v414, %v532
    %v534 = vpop.f32.mrb[0].mxu0
    %535 = vmatprep.mubr.bf16.mxu0 0
    %536 = vmatmul.mubr.bf16.gmra.mrb[0].mxu0 %v392
    %v537 = vpop.f32.mrb[0].mxu0
    %v538 = vadd.f32 %v414, %v537
    %v539 = vpop.f32.mrb[0].mxu0
    %v540 = vpop.f32.mrb[0].mxu0
    %v541 = vadd.f32 %v414, %v540
    %v542 = vpop.f32.mrb[0].mxu0
    %543 = vmatprep.mubr.bf16.mxu0 0
    %544 = vmatmul.mubr.bf16.gmra.mrb[0].mxu0 %v393
    %v545 = vpop.f32.mrb[0].mxu0
    %v546 = vadd.f32 %v414, %v545
    %v547 = vpop.f32.mrb[0].mxu0
    %v548 = vpop.f32.mrb[0].mxu0
    %v549 = vadd.f32 %v414, %v548
    %v550 = vpop.f32.mrb[0].mxu0
    %551 = vmatprep.mubr.bf16.mxu0 0
    %552 = vmatmul.mubr.bf16.gmra.mrb[0].mxu0 %v394
    %v553 = vpop.f32.mrb[0].mxu0
    %v554 = vadd.f32 %v414, %v553
    %v555 = vpop.f32.mrb[0].mxu0
    %v556 = vpop.f32.mrb[0].mxu0
    %v557 = vadd.f32 %v414, %v556
    %v558 = vpop.f32.mrb[0].mxu0
    %559 = vdwg.mxu0
    %v560 = vadd.f32 %v60, %v498
    %v561 = vadd.f32 %v61, %v501
    %v562 = vadd.f32 %v62, %v506
    %v563 = vadd.f32 %v63, %v509
    %v564 = vadd.f32 %v64, %v514
    %v565 = vadd.f32 %v65, %v517
    %v566 = vadd.f32 %v66, %v522
    %v567 = vadd.f32 %v67, %v525
    %v568 = vadd.f32 %v68, %v530
    %v569 = vadd.f32 %v69, %v533
    %v570 = vadd.f32 %v70, %v538
    %v571 = vadd.f32 %v71, %v541
    %v572 = vadd.f32 %v72, %v546
    %v573 = vadd.f32 %v73, %v549
    %v574 = vadd.f32 %v74, %v554
    %v575 = vadd.f32 %v75, %v557
    %v576 = vpack.c.bf16 %v561, %v560
    %v577 = vpack.c.bf16 %v563, %v562
    %v578 = vpack.c.bf16 %v565, %v564
    %v579 = vpack.c.bf16 %v567, %v566
    %v580 = vpack.c.bf16 %v569, %v568
    %v581 = vpack.c.bf16 %v571, %v570
    %v582 = vpack.c.bf16 %v573, %v572
    %v583 = vpack.c.bf16 %v575, %v574
    %v592 = vunpack.c.l.b16 %v576
    %v593 = vunpack.c.h.b16 %v576
    %v594 = vunpack.c.l.b16 %v577
    %v595 = vunpack.c.h.b16 %v577
    %v596 = vunpack.c.l.b16 %v578
    %v597 = vunpack.c.h.b16 %v578
    %v598 = vunpack.c.l.b16 %v579
    %v599 = vunpack.c.h.b16 %v579
    %v600 = vunpack.c.l.b16 %v580
    %v601 = vunpack.c.h.b16 %v580
    %v602 = vunpack.c.l.b16 %v581
    %v603 = vunpack.c.h.b16 %v581
    %v604 = vunpack.c.l.b16 %v582
    %v605 = vunpack.c.h.b16 %v582
    %v606 = vunpack.c.l.b16 %v583
    %v607 = vunpack.c.h.b16 %v583
    %v608 = vpack.c.b16 %v592, %v592
    %v609 = vpack.c.b16 %v593, %v593
    %v610 = vpack.c.b16 %v594, %v594
    %v611 = vpack.c.b16 %v595, %v595
    %v612 = vpack.c.b16 %v596, %v596
    %v613 = vpack.c.b16 %v597, %v597
    %v614 = vpack.c.b16 %v598, %v598
    %v615 = vpack.c.b16 %v599, %v599
    %v616 = vpack.c.b16 %v600, %v600
    %v617 = vpack.c.b16 %v601, %v601
    %v618 = vpack.c.b16 %v602, %v602
    %v619 = vpack.c.b16 %v603, %v603
    %v620 = vpack.c.b16 %v604, %v604
    %v621 = vpack.c.b16 %v605, %v605
    %v622 = vpack.c.b16 %v606, %v606
    %v623 = vpack.c.b16 %v607, %v607
    %640 = vst [vmem:[#allocation7] sm:$0xf] %v608
    %641 = vst [vmem:[#allocation7 + $0x4] sm:$0xf] %v609
    %642 = vst [vmem:[#allocation7 + $0x8] sm:$0xf] %v610
    %643 = vst [vmem:[#allocation7 + $0xc] sm:$0xf] %v611
    %644 = vst [vmem:[#allocation7 + $0x10] sm:$0xf] %v612
    %645 = vst [vmem:[#allocation7 + $0x14] sm:$0xf] %v613
    %646 = vst [vmem:[#allocation7 + $0x18] sm:$0xf] %v614
    %647 = vst [vmem:[#allocation7 + $0x1c] sm:$0xf] %v615
    %648 = vst [vmem:[#allocation7 + $0x20] sm:$0xf] %v616
    %649 = vst [vmem:[#allocation7 + $0x24] sm:$0xf] %v617
    %650 = vst [vmem:[#allocation7 + $0x28] sm:$0xf] %v618
    %651 = vst [vmem:[#allocation7 + $0x2c] sm:$0xf] %v619
    %652 = vst [vmem:[#allocation7 + $0x30] sm:$0xf] %v620
    %653 = vst [vmem:[#allocation7 + $0x34] sm:$0xf] %v621
    %654 = vst [vmem:[#allocation7 + $0x38] sm:$0xf] %v622
    %655 = vst [vmem:[#allocation7 + $0x3c] sm:$0xf] %v623
    // Predicated region
    $region22: #{tpu_custom_call.1} parent=1 // pred_check
      _
    $region23: #{tpu_custom_call.1} parent=1 // pred_check_branch
      %657 = sbr.rel (0) target = $region25
    $region24: #{tpu_custom_call.1} parent=1 // pred_region
      %s659 = ssub.s32 1024, 1024
      %660 = vsyncadd [#allocation4], %s659
      %s661 = sshll.u32 [#allocation7], 4
      %s662 = int_to_ptr.vmem [resolvable:$true] %s661
      %667 = dma.vmem_to_hbm [thread:$0]  %s662, 1024, %s3, [#allocation4], 64, 64, 4
    $region25: #{tpu_custom_call.1} parent=1 // pred_fallthru
      _
    // Predicated region
    $region26: #{tpu_custom_call.1} parent=1 // pred_check
      _
    $region27: #{tpu_custom_call.1} parent=1 // pred_check_branch
      %669 = sbr.rel (0) target = $region29
    $region28: #{tpu_custom_call.1} parent=1 // pred_region
      %670 = dma.done [#allocation4], 1024
    $region29: #{tpu_custom_call.1} parent=1 // pred_fallthru
      _
    %671 = vsyncpa [#allocation3], 1
    %672 = vsyncpa [#allocation6], 1
    %673 = vsyncpa [#allocation4], 1

</llo_original>
